<compile_context>
chip_gen: v5e
topology: v5e:2x2
jax: 0.10.0
libtpu: 0.0.40
codegen_flags: <defaults>
</compile_context>

<pallas_src>
import math

import jax
import jax.numpy as jnp
from jax.experimental import pallas as pl
from jax.experimental.pallas import tpu as pltpu


def _round_up(x, m):
    return (x + m - 1) // m * m


def _static_int(x):
    """int(x) if x is concrete (eager), else None (x is traced under jit)."""
    try:
        return int(x)
    except (jax.errors.ConcretizationTypeError,
            jax.errors.TracerIntegerConversionError):
        return None


# ----------------------------- ROI geometry --------------------------------
def _roi_geometry(rois, spatial_scale):
    rois = rois.astype(jnp.float32)
    center_w = rois[:, 1] * spatial_scale
    center_h = rois[:, 2] * spatial_scale
    roi_w = jnp.maximum(rois[:, 3] * spatial_scale, 1.0)
    roi_h = jnp.maximum(rois[:, 4] * spatial_scale, 1.0)
    theta = rois[:, 5] * (math.pi / 180.0)
    return center_w, center_h, roi_w, roi_h, theta


def _sample_coords(center_w, center_h, roi_w, roi_h, theta,
                   pooled_h, pooled_w, gh, gw):
    """Rotated-ROI sample coordinates, each [N, ph, pw, gh, gw] (f32)."""
    n = center_w.shape[0]

    def r5(a):
        return a.reshape(n, 1, 1, 1, 1)

    bin_h = roi_h / pooled_h
    bin_w = roi_w / pooled_w
    ph = jnp.arange(pooled_h, dtype=jnp.float32).reshape(1, pooled_h, 1, 1, 1)
    pw = jnp.arange(pooled_w, dtype=jnp.float32).reshape(1, 1, pooled_w, 1, 1)
    iy = jnp.arange(gh, dtype=jnp.float32).reshape(1, 1, 1, gh, 1)
    ix = jnp.arange(gw, dtype=jnp.float32).reshape(1, 1, 1, 1, gw)

    yy = -r5(roi_h) / 2.0 + ph * r5(bin_h) + (iy + 0.5) * r5(bin_h) / gh
    xx = -r5(roi_w) / 2.0 + pw * r5(bin_w) + (ix + 0.5) * r5(bin_w) / gw
    cos_t, sin_t = jnp.cos(theta), jnp.sin(theta)
    x = xx * r5(cos_t) + yy * r5(sin_t) + r5(center_w)
    y = yy * r5(cos_t) - xx * r5(sin_t) + r5(center_h)
    return x, y


def _bilinear_terms(x, y, feat_h, feat_w):
    """Clamp + corner indices + lerp fractions, matching the CUDA kernel."""
    valid = (y >= -1.0) & (y <= feat_h) & (x >= -1.0) & (x <= feat_w)
    y = jnp.maximum(y, 0.0)
    x = jnp.maximum(x, 0.0)
    y_low0 = jnp.floor(y).astype(jnp.int32)
    x_low0 = jnp.floor(x).astype(jnp.int32)
    y_edge = y_low0 >= feat_h - 1
    x_edge = x_low0 >= feat_w - 1
    y_low = jnp.where(y_edge, feat_h - 1, y_low0)
    y_high = jnp.where(y_edge, feat_h - 1, y_low0 + 1)
    y = jnp.where(y_edge, y_low.astype(jnp.float32), y)
    x_low = jnp.where(x_edge, feat_w - 1, x_low0)
    x_high = jnp.where(x_edge, feat_w - 1, x_low0 + 1)
    x = jnp.where(x_edge, x_low.astype(jnp.float32), x)
    ly = y - y_low.astype(jnp.float32)
    lx = x - x_low.astype(jnp.float32)
    return valid, y_low, y_high, x_low, x_high, ly, lx


def build_interp_matrix(center_w, center_h, roi_w, roi_h, theta,
                        flat_row_off, win_row0,
                        feat_h, feat_w, feat_w_pad, win_rows,
                        pooled_h, pooled_w, sampling_ratio):
    """Scatter-free per-ROI interpolation weights restricted to a row window.

    Returns [N, pooled_h*pooled_w, win_rows*feat_w_pad] f32.  Column
    (flat_row_off + y - win_row0) * feat_w_pad + x carries the bilinear weight
    of feature pixel (y, x) of the ROI's own map for each pooled bin.
    """
    assert sampling_ratio > 0, "adaptive sampling_ratio<=0 is data-dependent"
    # TODO(synk): sampling_ratio <= 0 (per-ROI adaptive grid) has no static
    # Pallas-friendly form; only the fixed-grid path is implemented.
    n = center_w.shape[0]
    gh = gw = int(sampling_ratio)
    count = float(gh * gw)

    x, y = _sample_coords(center_w, center_h, roi_w, roi_h, theta,
                          pooled_h, pooled_w, gh, gw)
    valid, y_low, y_high, x_low, x_high, ly, lx = _bilinear_terms(
        x, y, feat_h, feat_w)
    hy, hx = 1.0 - ly, 1.0 - lx
    scale = valid.astype(jnp.float32) / count

    off = flat_row_off.reshape(n, 1, 1, 1, 1).astype(jnp.int32)
    row0 = win_row0.reshape(n, 1, 1, 1, 1).astype(jnp.int32)
    r_low = off + y_low - row0
    r_high = off + y_high - row0

    # One-hot outer-product build (replaces the old scatter-add): zero-weight
    # or out-of-window samples contribute nothing automatically.
    wy = (hy[..., None] * jax.nn.one_hot(r_low, win_rows, dtype=jnp.float32)
          + ly[..., None] * jax.nn.one_hot(r_high, win_rows, dtype=jnp.float32))
    wy = wy * scale[..., None]
    wx = (hx[..., None] * jax.nn.one_hot(x_low, feat_w_pad, dtype=jnp.float32)
          + lx[..., None] * jax.nn.one_hot(x_high, feat_w_pad, dtype=jnp.float32))

    phw = pooled_h * pooled_w
    s = gh * gw
    wy = wy.reshape(n, phw, s, win_rows)
    wx = wx.reshape(n, phw, s, feat_w_pad)
    wmat = jnp.einsum("npsr,npsc->nprc", wy, wx)
    return wmat.reshape(n, phw, win_rows * feat_w_pad)


# --------------------------------------------------------------------------
# Pallas kernel: grouped (ROI-group, window-tile) matmul, accumulating
# directly into the resident f32 output block.
# --------------------------------------------------------------------------
def _roi_align_rotated_kernel(gstart_ref, needed_ref, w_ref, f_ref, o_ref):
    # w_ref: (1, G*phw_pad, tk)    bf16 interpolation weights, window tile k
    # f_ref: (tk, C_pad)           bf16 feature rows of the group's window tile
    # o_ref: (1, G*phw_pad, C_pad) f32 output block (resident across k)
    g = pl.program_id(0)
    k = pl.program_id(1)

    @pl.when(k == 0)
    def _():
        o_ref[...] = jnp.zeros_like(o_ref)

    @pl.when(k < needed_ref[g])        # past-the-window steps do nothing
    def _():
        o_ref[0] += jnp.dot(w_ref[0], f_ref[...],
                            preferred_element_type=jnp.float32)


class ROIAlignRotated:
    """Forward-only ROIAlignRotated (maskrcnn_benchmark semantics).

    Optional perf knobs:
      group_m_rows:     target MXU M dimension; G = group_m_rows // phw_pad
                        ROIs are packed per block (concrete-rois path).
      feat_tile_bytes:  target size of one feature window tile (per k step).
      max_window_tiles: static bound on the per-ROI row window (in row tiles)
                        used when `rois` is a jit tracer; None -> full height.
    """

    def __init__(self, output_size, spatial_scale, sampling_ratio,
                 group_m_rows=256, feat_tile_bytes=1 << 20,
                 max_window_tiles=None):
        self.output_size = (int(output_size[0]), int(output_size[1]))
        self.spatial_scale = float(spatial_scale)
        self.sampling_ratio = int(sampling_ratio)
        self.group_m_rows = int(group_m_rows)
        self.feat_tile_bytes = int(feat_tile_bytes)
        self.max_window_tiles = max_window_tiles

    def __call__(self, feat_nchw, rois):
        assert rois.shape[1] == 6
        n = rois.shape[0]
        b, c, h, w = feat_nchw.shape
        ph, pw = self.output_size
        phw = ph * pw
        phw_pad = _round_up(max(phw, 8), 8)
        cpad = _round_up(max(c, 128), 128)   # lane-dense features / output
        w_pad = _round_up(w, 16)             # keeps the row tile small for odd W

        # Rows per reduction tile (multiple of 8 so tk = rb*w_pad % 128 == 0),
        # sized so one feature tile is ~feat_tile_bytes (amortizes the ~0.35us
        # per-grid-step overhead and DMA setup).
        rb = self.feat_tile_bytes // (w_pad * cpad * 2)
        rb = max(8, rb // 8 * 8)
        rb = min(rb, _round_up(h, 8))
        tk = rb * w_pad
        h_pad = _round_up(h, rb)
        h_tiles = h_pad // rb
        total_tiles = b * h_tiles

        # ---- per-ROI geometry & vertical row window (flattened over batch) --
        cw, chh, rw, rh, th = _roi_geometry(rois, self.spatial_scale)
        binds = jnp.clip(rois[:, 0].astype(jnp.int32), 0, b - 1)
        hext = 0.5 * (jnp.abs(jnp.sin(th)) * rw + jnp.abs(jnp.cos(th)) * rh)
        row_lo = jnp.clip(jnp.floor(chh - hext) - 1.0, 0, h - 1).astype(jnp.int32)
        row_hi = jnp.clip(jnp.floor(chh + hext) + 2.0, 0, h - 1).astype(jnp.int32)
        flat_off = binds * h_pad             # first flattened row of ROI's map
        tile_lo = (flat_off + row_lo) // rb
        tile_hi = (flat_off + row_hi) // rb

        # ---- sort by (batch, window start); pack G ROIs per block -----------
        order = jnp.argsort(flat_off + row_lo)
        inv_order = jnp.argsort(order)

        max_roi_tiles = _static_int(jnp.max(tile_hi - tile_lo) + 1)
        if max_roi_tiles is None:
            # rois are jit-traced: the exact window cannot become a static grid
            # bound, so fall back to ungrouped ROIs with a static per-ROI
            # window (`max_window_tiles`, default = full map height).
            # TODO(synk): batch-uniform grouping with static shapes would let
            # the grouped path run under jit too.
            group = 1
            if self.max_window_tiles is None:
                k_tiles = h_tiles
            else:
                k_tiles = max(1, min(int(self.max_window_tiles), h_tiles))
        else:
            group = max(1, min(self.group_m_rows // phw_pad, n))
            k_tiles = None                   # derived from group windows below

        n_pad = _round_up(n, group)
        n_groups = n_pad // group

        def sort_pad(a):
            a = jnp.take(a, order, axis=0)
            if n_pad > n:
                a = jnp.concatenate(
                    [a, jnp.broadcast_to(a[-1:], (n_pad - n,) + a.shape[1:])], 0)
            return a

        cw_s, ch_s, rw_s, rh_s, th_s = map(sort_pad, (cw, chh, rw, rh, th))
        flat_off_s = sort_pad(flat_off)
        tile_lo_s = sort_pad(tile_lo)
        tile_hi_s = sort_pad(tile_hi)

        g_lo = tile_lo_s.reshape(n_groups, group).min(axis=1)
        g_hi = tile_hi_s.reshape(n_groups, group).max(axis=1)
        if k_tiles is None:
            k_tiles = int(jnp.max(g_hi - g_lo + 1))        # host, concrete
            k_tiles = max(1, min(k_tiles, total_tiles))
        g_start = jnp.clip(g_lo, 0, total_tiles - k_tiles).astype(jnp.int32)
        g_needed = jnp.clip(g_hi - g_start + 1, 1, k_tiles).astype(jnp.int32)

        # ---- interpolation weights against the group window (scatter-free) --
        win_rows = k_tiles * rb
        win_row0 = jnp.repeat(g_start, group) * rb
        wmat = build_interp_matrix(cw_s, ch_s, rw_s, rh_s, th_s,
                                   flat_off_s, win_row0,
                                   h, w, w_pad, win_rows, ph, pw,
                                   self.sampling_ratio)
        wmat = jnp.pad(wmat, ((0, 0), (0, phw_pad - phw), (0, 0)))
        wmat = wmat.astype(jnp.bfloat16).reshape(
            n_groups, group * phw_pad, win_rows * w_pad)

        # ---- feature map: NCHW -> [B*H_pad*W_pad, C_pad], channels on lanes -
        feat = jnp.transpose(feat_nchw, (0, 2, 3, 1)).astype(jnp.bfloat16)
        feat = jnp.pad(feat, ((0, 0), (0, h_pad - h), (0, w_pad - w),
                              (0, cpad - c)))
        feat = feat.reshape(b * h_pad * w_pad, cpad)

        m_blk = group * phw_pad
        vmem_est = (2 * m_blk * tk * 2 + 2 * tk * cpad * 2
                    + 2 * m_blk * cpad * 4)
        vmem_limit = int(min(56 * 2**20, max(16 * 2**20, 2 * vmem_est)))

        out = pl.pallas_call(
            _roi_align_rotated_kernel,
            out_shape=jax.ShapeDtypeStruct((n_groups, m_blk, cpad),
                                           jnp.float32),
            grid_spec=pltpu.PrefetchScalarGridSpec(
                num_scalar_prefetch=2,
                grid=(n_groups, k_tiles),
                in_specs=[
                    pl.BlockSpec(
                        (1, m_blk, tk),
                        lambda g, k, gs, nd: (g, 0, jnp.minimum(k, nd[g] - 1))),
                    pl.BlockSpec(
                        (tk, cpad),
                        lambda g, k, gs, nd: (gs[g] + jnp.minimum(k, nd[g] - 1),
                                              0)),
                ],
                out_specs=pl.BlockSpec((1, m_blk, cpad),
                                       lambda g, k, gs, nd: (g, 0, 0)),
            ),
            compiler_params=pltpu.CompilerParams(
                dimension_semantics=("parallel", "arbitrary"),
                vmem_limit_bytes=vmem_limit),
        )(g_start, g_needed, wmat, feat)

        # Un-group, un-sort, strip padding.  (The un-sort gather stays outside
        # the kernel: with G ROIs per output block a data-dependent out map
        # cannot target the original per-ROI positions.)
        out = out.reshape(n_pad, phw_pad, cpad)[:n]
        out = jnp.take(out, inv_order, axis=0)[:, :phw, :c]
        out = out.reshape(n, ph, pw, c).transpose(0, 3, 1, 2)
        return out.astype(feat_nchw.dtype)


# ----------------------------- pure-JAX reference --------------------------
def roi_align_rotated_reference(feat_nchw, rois, output_size, spatial_scale,
                                sampling_ratio):
    b, c, h, w = feat_nchw.shape
    ph, pw = output_size
    n = rois.shape[0]
    gh = gw = int(sampling_ratio)
    cw, chh, rw, rh, th = _roi_geometry(rois, spatial_scale)
    x, y = _sample_coords(cw, chh, rw, rh, th, ph, pw, gh, gw)
    valid, y_low, y_high, x_low, x_high, ly, lx = _bilinear_terms(x, y, h, w)
    hy, hx = 1.0 - ly, 1.0 - lx
    w1, w2, w3, w4 = hy * hx, hy * lx, ly * hx, ly * lx
    binds = jnp.clip(rois[:, 0].astype(jnp.int32), 0, b - 1)
    fmap = jnp.transpose(feat_nchw, (0, 2, 3, 1))[binds]   # [n, h, w, c]
    n_idx = jnp.arange(n).reshape(n, 1, 1, 1, 1)

    def at(yc, xc):
        return fmap[n_idx, yc, xc]          # [n, ph, pw, gh, gw, c]

    val = (w1[..., None] * at(y_low, x_low) + w2[..., None] * at(y_low, x_high)
           + w3[..., None] * at(y_high, x_low)
           + w4[..., None] * at(y_high, x_high))
    val = val * valid[..., None]
    out = val.sum(axis=(3, 4)) / float(gh * gw)             # [n, ph, pw, c]
    return jnp.transpose(out, (0, 3, 1, 2))


if __name__ == "__main__":
    key = jax.random.PRNGKey(0)
    k_feat, k_bi, k_c, k_s, k_t = jax.random.split(key, 5)

    B, C, H, W = 2, 4, 16, 16
    N_ROIS = 5
    POOLED = (4, 4)
    SPATIAL_SCALE = 0.5
    SAMPLING_RATIO = 2

    feat = jax.random.normal(k_feat, (B, C, H, W), dtype=jnp.float32)
    batch_ind = jax.random.randint(k_bi, (N_ROIS,), 0, B).astype(jnp.float32)
    centers = jax.random.uniform(k_c, (N_ROIS, 2), minval=8.0, maxval=24.0)
    sizes = jax.random.uniform(k_s, (N_ROIS, 2), minval=6.0, maxval=20.0)
    thetas = jax.random.uniform(k_t, (N_ROIS, 1), minval=-60.0, maxval=60.0)
    rois = jnp.concatenate(
        [batch_ind[:, None], centers, sizes, thetas], axis=1)

    module = ROIAlignRotated(POOLED, SPATIAL_SCALE, SAMPLING_RATIO)
    out = jax.block_until_ready(module(feat, rois))
    assert out.shape == (N_ROIS, C, POOLED[0], POOLED[1])

    ref = roi_align_rotated_reference(feat, rois, POOLED, SPATIAL_SCALE,
                                      SAMPLING_RATIO)
    err = float(jnp.max(jnp.abs(out - ref)))
    # bf16 operands (f32 MXU accumulation) vs f32 reference.
    assert jnp.allclose(out, ref, atol=5e-2, rtol=5e-2), err

    print("KERNEL_OK")
</pallas_src>

<mosaic_0001>
module attributes {stable_mosaic.version = 11 : i64} {
  func.func @_roi_align_rotated_kernel(%arg0: i32, %arg1: i32, %arg2: memref<1xi32, #tpu.memory_space<smem>>, %arg3: memref<1xi32, #tpu.memory_space<smem>>, %arg4: memref<1x80x256xbf16, #tpu.memory_space<vmem>>, %arg5: memref<256x128xbf16, #tpu.memory_space<vmem>>, %arg6: memref<1x80x128xf32, #tpu.memory_space<vmem>>) attributes {dimension_semantics = [#tpu.dimension_semantics<parallel>, #tpu.dimension_semantics<arbitrary>], iteration_bounds = array<i64: 1, 2>, scalar_prefetch = 2 : i64, scratch_operands = 0 : i64, tpu.core_type = #tpu.core_type<tc>, window_params = [{transform_indices = @transform_0, window_bounds = array<i64: 1, 80, 256>}, {transform_indices = @transform_1, window_bounds = array<i64: 256, 128>}, {transform_indices = @transform_2, window_bounds = array<i64: 1, 80, 128>}]} {
    %c0_i32 = arith.constant 0 : i32
    %0 = arith.cmpi eq, %arg1, %c0_i32 : i32
    %1 = arith.extui %0 : i1 to i32
    %c0_i32_0 = arith.constant 0 : i32
    %2 = arith.cmpi ne, %1, %c0_i32_0 : i32
    scf.if %2 {
      %cst = arith.constant 0.000000e+00 : f32
      %8 = vector.broadcast %cst : f32 to vector<1x80x128xf32>
      %c0 = arith.constant 0 : index
      %c0_2 = arith.constant 0 : index
      %c0_3 = arith.constant 0 : index
      %9 = vector.load %arg6[%c0, %c0_2, %c0_3] : memref<1x80x128xf32, #tpu.memory_space<vmem>>, vector<1x80x128xf32>
      tpu.vector_store %arg6[%c0, %c0_2, %c0_3], %8 {strides = array<i32>} : memref<1x80x128xf32, #tpu.memory_space<vmem>>, vector<1x80x128xf32>,
    } else {
    }
    %3 = arith.index_cast %arg0 : i32 to index
    %4 = memref.load %arg3[%3] : memref<1xi32, #tpu.memory_space<smem>>
    %5 = arith.cmpi slt, %arg1, %4 : i32
    %6 = arith.extui %5 : i1 to i32
    %c0_i32_1 = arith.constant 0 : i32
    %7 = arith.cmpi ne, %6, %c0_i32_1 : i32
    scf.if %7 {
      %c0 = arith.constant 0 : index
      %c0_2 = arith.constant 0 : index
      %c0_3 = arith.constant 0 : index
      %8 = vector.load %arg6[%c0, %c0_2, %c0_3] : memref<1x80x128xf32, #tpu.memory_space<vmem>>, vector<1x80x128xf32>
      %9 = vector.shape_cast %8 : vector<1x80x128xf32> to vector<80x128xf32>
      %c0_4 = arith.constant 0 : index
      %c0_5 = arith.constant 0 : index
      %c0_6 = arith.constant 0 : index
      %10 = vector.load %arg4[%c0_4, %c0_5, %c0_6] : memref<1x80x256xbf16, #tpu.memory_space<vmem>>, vector<1x80x256xbf16>
      %11 = vector.shape_cast %10 : vector<1x80x256xbf16> to vector<80x256xbf16>
      %c0_7 = arith.constant 0 : index
      %c0_8 = arith.constant 0 : index
      %12 = vector.load %arg5[%c0_7, %c0_8] : memref<256x128xbf16, #tpu.memory_space<vmem>>, vector<256x128xbf16>
      %cst = arith.constant dense<0.000000e+00> : vector<80x128xf32>
      %13 = tpu.matmul %11, %12, %cst {dimension_numbers = #tpu.dot_dimension_numbers<[1], [0], [0], [1], [0, 0, 1, 1], [], []>} : vector<80x256xbf16>, vector<256x128xbf16>, vector<80x128xf32> -> vector<80x128xf32>
      %14 = arith.addf %9, %13 : vector<80x128xf32>
      %c0_9 = arith.constant 0 : index
      %c0_10 = arith.constant 0 : index
      %c0_11 = arith.constant 0 : index
      %15 = vector.load %arg6[%c0_9, %c0_10, %c0_11] : memref<1x80x128xf32, #tpu.memory_space<vmem>>, vector<1x80x128xf32>
      %16 = vector.shape_cast %15 : vector<1x80x128xf32> to vector<80x128xf32>
      %17 = vector.shape_cast %14 : vector<80x128xf32> to vector<1x80x128xf32>
      tpu.vector_store %arg6[%c0_9, %c0_10, %c0_11], %17 {strides = array<i32>} : memref<1x80x128xf32, #tpu.memory_space<vmem>>, vector<1x80x128xf32>,
    } else {
    }
    return
  }
  func.func @transform_0(%arg0: i32, %arg1: i32, %arg2: memref<1xi32, #tpu.memory_space<smem>>, %arg3: memref<1xi32, #tpu.memory_space<smem>>) -> (i32, i32, i32) {
    %0 = arith.index_cast %arg0 : i32 to index
    %1 = memref.load %arg3[%0] : memref<1xi32, #tpu.memory_space<smem>>
    %c1_i32 = arith.constant 1 : i32
    %2 = arith.subi %1, %c1_i32 : i32
    %3 = arith.minsi %arg1, %2 : i32
    %c0_i32 = arith.constant 0 : i32
    %c0_i32_0 = arith.constant 0 : i32
    return %arg0, %c0_i32, %3 : i32, i32, i32
  }
  func.func @transform_1(%arg0: i32, %arg1: i32, %arg2: memref<1xi32, #tpu.memory_space<smem>>, %arg3: memref<1xi32, #tpu.memory_space<smem>>) -> (i32, i32) {
    %0 = arith.index_cast %arg0 : i32 to index
    %1 = memref.load %arg2[%0] : memref<1xi32, #tpu.memory_space<smem>>
    %2 = arith.index_cast %arg0 : i32 to index
    %3 = memref.load %arg3[%2] : memref<1xi32, #tpu.memory_space<smem>>
    %c1_i32 = arith.constant 1 : i32
    %4 = arith.subi %3, %c1_i32 : i32
    %5 = arith.minsi %arg1, %4 : i32
    %6 = arith.addi %1, %5 : i32
    %c0_i32 = arith.constant 0 : i32
    %c0_i32_0 = arith.constant 0 : i32
    return %6, %c0_i32 : i32, i32
  }
  func.func @transform_2(%arg0: i32, %arg1: i32, %arg2: memref<1xi32, #tpu.memory_space<smem>>, %arg3: memref<1xi32, #tpu.memory_space<smem>>) -> (i32, i32, i32) {
    %c0_i32 = arith.constant 0 : i32
    %c0_i32_0 = arith.constant 0 : i32
    %c0_i32_1 = arith.constant 0 : i32
    return %arg0, %c0_i32, %c0_i32_0 : i32, i32, i32
  }
}

</mosaic_0001>

<llo_original>
// kernel: tpu_custom_call.1
$region0: #{tpu_custom_call.1}
  #allocation0 [shape = 'u32[]', space=smem, size = 0x4, offset = 0x4, fixed_abs, tag = 'smem constant byte address 0x4 - core index']
  #allocation1 [shape = 'u32[72,128]{1,0:T(1,128)}', space=vmem, size = 0x9000, scoped, tag = 'internal scratch']
  #allocation2 [shape = 's32[1]{0}', space=sflag, size = 0x4, scoped, tag = 'scoped memory for tpu_custom_call.1']
  #allocation3 [shape = 's32[1]{0:T(128)S(6)}', space=smem, size = 0x200, scoped, tag = 'prefetched SMEM operand 0']
  #allocation4 [shape = 's32[1]{0:T(128)S(6)}', space=smem, size = 0x200, scoped, tag = 'prefetched SMEM operand 1']
  %s0 = inlined_call_operand.<no memory space> [shape: s32[1], index: 0, kind: input, shape index: {}]
  %s1 = inlined_call_operand.<no memory space> [shape: s32[1], index: 1, kind: input, shape index: {}]
  %s2 = inlined_call_operand.hbm [shape: bf16[1,80,512], index: 2, kind: input, shape index: {}]
  %s3 = inlined_call_operand.hbm [shape: bf16[512,128], index: 3, kind: input, shape index: {}]
  %s4 = inlined_call_operand.hbm [shape: f32[1,80,128], index: 4, kind: output, shape index: {}]
  %s5 = sld [smem:[#allocation0]]
  $region57: #{tpu_custom_call.1} parent=0
    _
  %s7 = ssub.s32 1, %s5
  %s8 = scalar_select 0, %s7, %s5
  %9 = sst [smem:[#allocation3]] %s0
  %10 = sst [smem:[#allocation4]] %s1
  $region1: #{tpu_custom_call.1} parent=0
    #allocation5 [shape = 'u8[81920]{0}', space=vmem, size = 0x14000, scoped, tag = 'input window, operand 2']
    #allocation6 [shape = 's32[2]{0}', space=sflag, size = 0x8, scoped, tag = 'scoped memory for tpu_custom_call.1']
    #allocation7 [shape = 's32[2]{0}', space=sflag, size = 0x8, scoped, tag = 'scoped memory for tpu_custom_call.1']
    #allocation8 [shape = 'u8[131072]{0}', space=vmem, size = 0x20000, scoped, tag = 'input window, operand 3']
    #allocation9 [shape = 's32[2]{0}', space=sflag, size = 0x8, scoped, tag = 'scoped memory for tpu_custom_call.1']
    #allocation10 [shape = 'u8[40960]{0}', space=vmem, size = 0xa000, scoped, tag = 'output window, operand 0, single buffered']
    %11 = vsyncpa [#allocation6], 0
    %s12 = scalar_lea.sflag [#allocation6], 1
    %13 = vsyncpa %s12, 0
    %14 = vsyncpa [#allocation9], 0
    %s15 = scalar_lea.sflag [#allocation9], 1
    %16 = vsyncpa %s15, 0
    %17 = vsyncpa [#allocation7], 0
    loop: start=0, step=1, limit=4
    $region2: #{tpu_custom_call.1} parent=1 // loop_pre_header
      _
    $region3: #{tpu_custom_call.1} parent=1 // loop_header
      %s19 = sphi 0, %s23
      %p20 = scmp.ge.s32.totalorder %s19, 4
      %s26 = sphi 0, %s38
      %s27 = sphi 0, %s34
      %s28 = sphi 0, %s26
      %s29 = sphi 0, %s27
      %s30 = sphi 0, %s28
      %s31 = sphi 0, %s29
      %s51 = sphi 0, %s53
      %s54 = sphi 0, %s51
      %s55 = sphi 0, %s54
      %s71 = sphi 0, %s55
      %s89 = sphi 0, %s91
      %s92 = sphi 0, %s89
      %s93 = sphi 0, %s92
      %s109 = sphi 0, %s93
      %s115 = sphi 0, %s117
      %s118 = sphi 0, %s115
      %s119 = sphi 0, %s118
      %s135 = sphi 0, %s119
    $region4: #{tpu_custom_call.1} parent=1 // loop_header_branch
      %22 = sbr.rel (%p20) target = $region8
    $region5: #{tpu_custom_call.1} parent=1 // loop_body
      %s24 = ssub.s32 %s19, 1
      %s25 = ssub.s32 %s19, 2
      %s32 = sadd.s32 1, %s27
      %p33 = scmp.ge.s32.totalorder %s32, 2
      %s34 = scalar_select %p33, 0, %s32
      %s35 = sadd.s32 1, %s26
      %s36 = scalar_select %p33, %s35, %s26
      %p37 = scmp.ge.s32.totalorder %s36, 1
      %s38 = scalar_select %p37, 0, %s36
      %s39 = sld [smem:[#allocation4 + %s26]]
      %s40 = ssub.s32 %s39, 1
      %p41 = scmp.lt.s32.totalorder %s27, %s40
      %s42 = scalar_select %p41, %s27, %s40
      %s43 = sld [smem:[#allocation4 + %s38]]
      %s44 = ssub.s32 %s43, 1
      %p45 = scmp.lt.s32.totalorder %s34, %s44
      %s46 = scalar_select %p45, %s34, %s44
      %s47 = ssub.s32 %s26, %s38
      %s48 = ssub.s32 %s42, %s46
      %s49 = sor.u32 %s47, %s48
      %p50 = scmp.eq.s32.totalorder %s49, 0
      %s52 = sadd.s32 %s51, 1
      %s53 = scalar_select %p50, %s51, %s52
      %p56 = pneg %p50
      %p57 = scmp.eq.s32.totalorder %s19, 1
      %p58 = por %p56, %p57
      %p59 = scmp.ne.s32.totalorder %s51, %s54
      %p60 = scmp.eq.s32.totalorder %s19, 0
      %p61 = por %p59, %p60
      %p62 = scmp.ne.s32.totalorder %s51, %s54
      %p63 = scmp.eq.s32.totalorder %s24, 1
      %p64 = por %p62, %p63
      %p65 = scmp.ne.s32.totalorder %s54, %s55
      %p66 = scmp.eq.s32.totalorder %s24, 0
      %p67 = por %p65, %p66
      %p68 = scmp.ne.s32.totalorder %s54, %s55
      %p69 = scmp.eq.s32.totalorder %s25, 1
      %p70 = por %p68, %p69
      %p72 = scmp.ne.s32.totalorder %s55, %s71
      %p73 = scmp.eq.s32.totalorder %s25, 0
      %p74 = por %p72, %p73
      %s75 = sld [smem:[#allocation3 + %s26]]
      %s76 = sld [smem:[#allocation4 + %s26]]
      %s77 = ssub.s32 %s76, 1
      %p78 = scmp.lt.s32.totalorder %s27, %s77
      %s79 = scalar_select %p78, %s27, %s77
      %s80 = sadd.s32 %s75, %s79
      %s81 = sld [smem:[#allocation3 + %s38]]
      %s82 = sld [smem:[#allocation4 + %s38]]
      %s83 = ssub.s32 %s82, 1
      %p84 = scmp.lt.s32.totalorder %s34, %s83
      %s85 = scalar_select %p84, %s34, %s83
      %s86 = sadd.s32 %s81, %s85
      %s87 = ssub.s32 %s80, %s86
      %p88 = scmp.eq.s32.totalorder %s87, 0
      %s90 = sadd.s32 %s89, 1
      %s91 = scalar_select %p88, %s89, %s90
      %p94 = pneg %p88
      %p95 = scmp.eq.s32.totalorder %s19, 1
      %p96 = por %p94, %p95
      %p97 = scmp.ne.s32.totalorder %s89, %s92
      %p98 = scmp.eq.s32.totalorder %s19, 0
      %p99 = por %p97, %p98
      %p100 = scmp.ne.s32.totalorder %s89, %s92
      %p101 = scmp.eq.s32.totalorder %s24, 1
      %p102 = por %p100, %p101
      %p103 = scmp.ne.s32.totalorder %s92, %s93
      %p104 = scmp.eq.s32.totalorder %s24, 0
      %p105 = por %p103, %p104
      %p106 = scmp.ne.s32.totalorder %s92, %s93
      %p107 = scmp.eq.s32.totalorder %s25, 1
      %p108 = por %p106, %p107
      %p110 = scmp.ne.s32.totalorder %s93, %s109
      %p111 = scmp.eq.s32.totalorder %s25, 0
      %p112 = por %p110, %p111
      %s113 = ssub.s32 %s26, %s38
      %p114 = scmp.eq.s32.totalorder %s113, 0
      %s116 = sadd.s32 %s115, 1
      %s117 = scalar_select %p114, %s115, %s116
      %p120 = pneg %p114
      %p121 = scmp.eq.s32.totalorder %s19, 1
      %p122 = por %p120, %p121
      %p123 = scmp.ne.s32.totalorder %s115, %s118
      %p124 = scmp.eq.s32.totalorder %s19, 0
      %p125 = por %p123, %p124
      %p126 = scmp.ne.s32.totalorder %s115, %s118
      %p127 = scmp.eq.s32.totalorder %s24, 1
      %p128 = por %p126, %p127
      %p129 = scmp.ne.s32.totalorder %s118, %s119
      %p130 = scmp.eq.s32.totalorder %s24, 0
      %p131 = por %p129, %p130
      %p132 = scmp.ne.s32.totalorder %s118, %s119
      %p133 = scmp.eq.s32.totalorder %s25, 1
      %p134 = por %p132, %p133
      %p136 = scmp.ne.s32.totalorder %s119, %s135
      %p137 = scmp.eq.s32.totalorder %s25, 0
      %p138 = por %p136, %p137
      %p139 = scmp.le.s32.totalorder 1, %s19
      %p140 = scmp.lt.s32.totalorder %s19, 3
      %p141 = pnand %p139, %p140
      %p142 = pneg %p141
      // Predicated region
      $region9: #{tpu_custom_call.1} parent=5 // pred_check
        _
      $region10: #{tpu_custom_call.1} parent=5 // pred_check_branch
        %144 = sbr.rel (%p141) target = $region12
      $region11: #{tpu_custom_call.1} parent=5 // pred_region
        %s145 = ssub.s32 %s19, 1
      $region12: #{tpu_custom_call.1} parent=5 // pred_fallthru
        _
      %p146 = scmp.lt.s32.totalorder %s19, 2
      // Predicated region
      $region13: #{tpu_custom_call.1} parent=5 // pred_check
        %p147 = pneg %p146
      $region14: #{tpu_custom_call.1} parent=5 // pred_check_branch
        %149 = sbr.rel (%p147) target = $region16
      $region15: #{tpu_custom_call.1} parent=5 // pred_region
        // Predicated region
        $region17: #{tpu_custom_call.1} parent=15 // pred_check
          %p150 = pneg %p61
        $region18: #{tpu_custom_call.1} parent=15 // pred_check_branch
          %152 = sbr.rel (%p150) target = $region20
        $region19: #{tpu_custom_call.1} parent=15 // pred_region
          %s153 = sand.u32 %s51, 1
          %s154 = scalar_lea.sflag [#allocation6], %s153
          %s155 = sand.u32 %s51, 1
          %s156 = smul.addr %s155, 80
          %s157 = scalar_lea.vmem [#allocation5], %s156
          %s158 = sld [smem:[#allocation4 + %s26]]
          %s159 = ssub.s32 %s158, 1
          %p160 = scmp.lt.s32.totalorder %s27, %s159
          %s161 = scalar_select %p160, %s27, %s159
          %s162 = smul.u32 2, %s161
          %164 = vsyncadd %s154, 0
          %s165 = smul.addr %s26, 40
          %s166 = sadd.s32 %s162, %s165
          %s167 = smul.addr %s166, 4
          %s168 = scalar_lea.hbm %s2, %s167
          %s169 = sshll.u32 %s168, 4
          %s170 = int_to_ptr.hbm [resolvable:$true] %s169
          %s171 = sshll.u32 %s157, 4
          %s172 = int_to_ptr.vmem [resolvable:$true] %s171
          %177 = dma.hbm_to_vmem [thread:$0]  %s170, 1280, %s172, %s154, 256, 128, 8
        $region20: #{tpu_custom_call.1} parent=15 // pred_fallthru
          _
        // Predicated region
        $region21: #{tpu_custom_call.1} parent=15 // pred_check
          %p178 = pneg %p99
        $region22: #{tpu_custom_call.1} parent=15 // pred_check_branch
          %180 = sbr.rel (%p178) target = $region24
        $region23: #{tpu_custom_call.1} parent=15 // pred_region
          %s181 = sand.u32 %s89, 1
          %s182 = scalar_lea.sflag [#allocation9], %s181
          %s183 = sand.u32 %s89, 1
          %s184 = smul.addr %s183, 128
          %s185 = scalar_lea.vmem [#allocation8], %s184
          %s186 = sld [smem:[#allocation3 + %s26]]
          %s187 = sld [smem:[#allocation4 + %s26]]
          %s188 = ssub.s32 %s187, 1
          %p189 = scmp.lt.s32.totalorder %s27, %s188
          %s190 = scalar_select %p189, %s27, %s188
          %s191 = sadd.s32 %s186, %s190
          %s192 = smul.u32 32, %s191
          %194 = vsyncadd %s182, 0
          %s195 = smul.addr %s192, 4
          %s196 = scalar_lea.hbm %s3, %s195
          %s197 = sshll.u32 %s196, 4
          %s198 = int_to_ptr.hbm [resolvable:$true] %s197
          %s199 = sshll.u32 %s185, 4
          %s200 = int_to_ptr.vmem [resolvable:$true] %s199
          %205 = dma.hbm_to_vmem [thread:$0]  %s198, 2048, %s200, %s182, 64, 64, 4
        $region24: #{tpu_custom_call.1} parent=15 // pred_fallthru
          _
      $region16: #{tpu_custom_call.1} parent=5 // pred_fallthru
        _
      %p206 = scmp.le.s32.totalorder 1, %s19
      %p207 = scmp.lt.s32.totalorder %s19, 3
      %p208 = pnand %p206, %p207
      %p209 = pneg %p208
      // Predicated region
      $region25: #{tpu_custom_call.1} parent=5 // pred_check
        _
      $region26: #{tpu_custom_call.1} parent=5 // pred_check_branch
        %211 = sbr.rel (%p208) target = $region28
      $region27: #{tpu_custom_call.1} parent=5 // pred_region
        %s212 = ssub.s32 %s19, 1
        %s213 = sand.u32 %s54, 1
        %s214 = scalar_lea.sflag [#allocation6], %s213
        %s215 = sand.u32 %s54, 1
        %s216 = smul.addr %s215, 80
        %s217 = scalar_lea.vmem [#allocation5], %s216
        // Predicated region
        $region29: #{tpu_custom_call.1} parent=27 // pred_check
          %p218 = pneg %p67
        $region30: #{tpu_custom_call.1} parent=27 // pred_check_branch
          %220 = sbr.rel (%p218) target = $region32
        $region31: #{tpu_custom_call.1} parent=27 // pred_region
          %222 = dma.done %s214, 1280
        $region32: #{tpu_custom_call.1} parent=27 // pred_fallthru
          _
        %s223 = sand.u32 %s92, 1
        %s224 = scalar_lea.sflag [#allocation9], %s223
        %s225 = sand.u32 %s92, 1
        %s226 = smul.addr %s225, 128
        %s227 = scalar_lea.vmem [#allocation8], %s226
        // Predicated region
        $region33: #{tpu_custom_call.1} parent=27 // pred_check
          %p228 = pneg %p105
        $region34: #{tpu_custom_call.1} parent=27 // pred_check_branch
          %230 = sbr.rel (%p228) target = $region36
        $region35: #{tpu_custom_call.1} parent=27 // pred_region
          %232 = dma.done %s224, 2048
        $region36: #{tpu_custom_call.1} parent=27 // pred_fallthru
          _
        %s233 = sand.u32 %s54, 1
        %s234 = scalar_lea.sflag [#allocation6], %s233
        %s235 = sand.u32 %s54, 1
        %s236 = smul.addr %s235, 80
        %s237 = scalar_lea.vmem [#allocation5], %s236
        %p238 = pneg %p67
        %p239 = pneg %p64
        %s240 = sand.u32 %s92, 1
        %s241 = scalar_lea.sflag [#allocation9], %s240
        %s242 = sand.u32 %s92, 1
        %s243 = smul.addr %s242, 128
        %s244 = scalar_lea.vmem [#allocation8], %s243
        %p245 = pneg %p105
        %p246 = pneg %p102
        %p247 = pneg %p131
        %p248 = pneg %p128
        %s249 = sld [smem:[#allocation4 + %s28]]
        %s250 = ssub.s32 %s249, 1
        %p251 = scmp.lt.s32.totalorder %s29, %s250
        %s252 = scalar_select %p251, %s29, %s250
        %s253 = smul.u32 2, %s252
        %s254 = sld [smem:[#allocation3 + %s28]]
        %s255 = sld [smem:[#allocation4 + %s28]]
        %s256 = ssub.s32 %s255, 1
        %p257 = scmp.lt.s32.totalorder %s29, %s256
        %s258 = scalar_select %p257, %s29, %s256
        %s259 = sadd.s32 %s254, %s258
        %s260 = smul.u32 32, %s259
        %p261 = scmp.eq.s32.totalorder %s29, 0
        // Predicated region
        $region37: #{tpu_custom_call.1} parent=27 // pred_check
          %p262 = pneg %p261
        $region38: #{tpu_custom_call.1} parent=27 // pred_check_branch
          %264 = sbr.rel (%p262) target = $region40
        $region39: #{tpu_custom_call.1} parent=27 // pred_region
          %265 = vst [vmem:[#allocation10] sm:$0xff] 0.0
          %266 = vst [vmem:[#allocation10 + $0x8] sm:$0xff] 0.0
          %267 = vst [vmem:[#allocation10 + $0x10] sm:$0xff] 0.0
          %268 = vst [vmem:[#allocation10 + $0x18] sm:$0xff] 0.0
          %269 = vst [vmem:[#allocation10 + $0x20] sm:$0xff] 0.0
          %270 = vst [vmem:[#allocation10 + $0x28] sm:$0xff] 0.0
          %271 = vst [vmem:[#allocation10 + $0x30] sm:$0xff] 0.0
          %272 = vst [vmem:[#allocation10 + $0x38] sm:$0xff] 0.0
          %273 = vst [vmem:[#allocation10 + $0x40] sm:$0xff] 0.0
          %274 = vst [vmem:[#allocation10 + $0x48] sm:$0xff] 0.0
        $region40: #{tpu_custom_call.1} parent=27 // pred_fallthru
          _
        %s275 = sld [smem:[#allocation4 + %s28]]
        %p276 = scmp.lt.s32.totalorder %s29, %s275
        // Predicated region
        $region41: #{tpu_custom_call.1} parent=27 // pred_check
          %p277 = pneg %p276
        $region42: #{tpu_custom_call.1} parent=27 // pred_check_branch
          %279 = sbr.rel (%p277) target = $region44
        $region43: #{tpu_custom_call.1} parent=27 // pred_region
          %v280 = vld [vmem:[#allocation10] sm:$0xff]
          %v281 = vld [vmem:[#allocation10 + $0x8] sm:$0xff]
          %v282 = vld [vmem:[#allocation10 + $0x10] sm:$0xff]
          %v283 = vld [vmem:[#allocation10 + $0x18] sm:$0xff]
          %v284 = vld [vmem:[#allocation10 + $0x20] sm:$0xff]
          %v285 = vld [vmem:[#allocation10 + $0x28] sm:$0xff]
          %v286 = vld [vmem:[#allocation10 + $0x30] sm:$0xff]
          %v287 = vld [vmem:[#allocation10 + $0x38] sm:$0xff]
          %v288 = vld [vmem:[#allocation10 + $0x40] sm:$0xff]
          %v289 = vld [vmem:[#allocation10 + $0x48] sm:$0xff]
          %v290 = vld [vmem:[%s217] sm:$0xff]
          %v291 = vld [vmem:[%s217 + $0x8] sm:$0xff]
          %v292 = vld [vmem:[%s217 + $0x10] sm:$0xff]
          %v293 = vld [vmem:[%s217 + $0x18] sm:$0xff]
          %v294 = vld [vmem:[%s217 + $0x20] sm:$0xff]
          %v295 = vld [vmem:[%s217 + $0x28] sm:$0xff]
          %v296 = vld [vmem:[%s217 + $0x30] sm:$0xff]
          %v297 = vld [vmem:[%s217 + $0x38] sm:$0xff]
          %v298 = vld [vmem:[%s217 + $0x40] sm:$0xff]
          %v299 = vld [vmem:[%s217 + $0x48] sm:$0xff]
          %v300 = vld [vmem:[%s227] sm:$0xf]
          %v301 = vld [vmem:[%s227 + $0x4] sm:$0xf]
          %v302 = vld [vmem:[%s227 + $0x8] sm:$0xf]
          %v303 = vld [vmem:[%s227 + $0xc] sm:$0xf]
          %v304 = vld [vmem:[%s227 + $0x10] sm:$0xf]
          %v305 = vld [vmem:[%s227 + $0x14] sm:$0xf]
          %v306 = vld [vmem:[%s227 + $0x18] sm:$0xf]
          %v307 = vld [vmem:[%s227 + $0x1c] sm:$0xf]
          %v308 = vld [vmem:[%s227 + $0x20] sm:$0xf]
          %v309 = vld [vmem:[%s227 + $0x24] sm:$0xf]
          %v310 = vld [vmem:[%s227 + $0x28] sm:$0xf]
          %v311 = vld [vmem:[%s227 + $0x2c] sm:$0xf]
          %v312 = vld [vmem:[%s227 + $0x30] sm:$0xf]
          %v313 = vld [vmem:[%s227 + $0x34] sm:$0xf]
          %v314 = vld [vmem:[%s227 + $0x38] sm:$0xf]
          %v315 = vld [vmem:[%s227 + $0x3c] sm:$0xf]
          %v316 = vld [vmem:[%s227 + $0x40] sm:$0xf]
          %v317 = vld [vmem:[%s227 + $0x44] sm:$0xf]
          %v318 = vld [vmem:[%s227 + $0x48] sm:$0xf]
          %v319 = vld [vmem:[%s227 + $0x4c] sm:$0xf]
          %v320 = vld [vmem:[%s227 + $0x50] sm:$0xf]
          %v321 = vld [vmem:[%s227 + $0x54] sm:$0xf]
          %v322 = vld [vmem:[%s227 + $0x58] sm:$0xf]
          %v323 = vld [vmem:[%s227 + $0x5c] sm:$0xf]
          %v324 = vld [vmem:[%s227 + $0x60] sm:$0xf]
          %v325 = vld [vmem:[%s227 + $0x64] sm:$0xf]
          %v326 = vld [vmem:[%s227 + $0x68] sm:$0xf]
          %v327 = vld [vmem:[%s227 + $0x6c] sm:$0xf]
          %v328 = vld [vmem:[%s227 + $0x70] sm:$0xf]
          %v329 = vld [vmem:[%s227 + $0x74] sm:$0xf]
          %v330 = vld [vmem:[%s227 + $0x78] sm:$0xf]
          %v331 = vld [vmem:[%s227 + $0x7c] sm:$0xf]
          %v342 = vunpack.c.l.b16 %v290
          %v343 = vunpack.c.h.b16 %v290
          %v344 = vunpack.c.l.b16 %v291
          %v345 = vunpack.c.h.b16 %v291
          %v346 = vunpack.c.l.b16 %v292
          %v347 = vunpack.c.h.b16 %v292
          %v348 = vunpack.c.l.b16 %v293
          %v349 = vunpack.c.h.b16 %v293
          %v350 = vunpack.c.l.b16 %v294
          %v351 = vunpack.c.h.b16 %v294
          %v352 = vunpack.c.l.b16 %v295
          %v353 = vunpack.c.h.b16 %v295
          %v354 = vunpack.c.l.b16 %v296
          %v355 = vunpack.c.h.b16 %v296
          %v356 = vunpack.c.l.b16 %v297
          %v357 = vunpack.c.h.b16 %v297
          %v358 = vunpack.c.l.b16 %v298
          %v359 = vunpack.c.h.b16 %v298
          %v360 = vunpack.c.l.b16 %v299
          %v361 = vunpack.c.h.b16 %v299
          %v362 = vpack.c.b16 %v344, %v342
          %v363 = vpack.c.b16 %v345, %v343
          %v364 = vpack.c.b16 %v348, %v346
          %v365 = vpack.c.b16 %v349, %v347
          %v366 = vpack.c.b16 %v352, %v350
          %v367 = vpack.c.b16 %v353, %v351
          %v368 = vpack.c.b16 %v356, %v354
          %v369 = vpack.c.b16 %v357, %v355
          %v370 = vpack.c.b16 %v360, %v358
          %v371 = vpack.c.b16 %v361, %v359
          %v414 = vunpack.c.l.b16 %v300
          %v415 = vunpack.c.l.b16 %v301
          %v416 = vunpack.c.l.b16 %v302
          %v417 = vunpack.c.l.b16 %v303
          %v418 = vunpack.c.l.b16 %v304
          %v419 = vunpack.c.l.b16 %v305
          %v420 = vunpack.c.l.b16 %v306
          %v421 = vunpack.c.l.b16 %v307
          %v422 = vunpack.c.l.b16 %v308
          %v423 = vunpack.c.l.b16 %v309
          %v424 = vunpack.c.l.b16 %v310
          %v425 = vunpack.c.l.b16 %v311
          %v426 = vunpack.c.l.b16 %v312
          %v427 = vunpack.c.l.b16 %v313
          %v428 = vunpack.c.l.b16 %v314
          %v429 = vunpack.c.l.b16 %v315
          %v430 = vunpack.c.l.b16 %v316
          %v431 = vunpack.c.l.b16 %v317
          %v432 = vunpack.c.l.b16 %v318
          %v433 = vunpack.c.l.b16 %v319
          %v434 = vunpack.c.l.b16 %v320
          %v435 = vunpack.c.l.b16 %v321
          %v436 = vunpack.c.l.b16 %v322
          %v437 = vunpack.c.l.b16 %v323
          %v438 = vunpack.c.l.b16 %v324
          %v439 = vunpack.c.l.b16 %v325
          %v440 = vunpack.c.l.b16 %v326
          %v441 = vunpack.c.l.b16 %v327
          %v442 = vunpack.c.l.b16 %v328
          %v443 = vunpack.c.l.b16 %v329
          %v444 = vunpack.c.l.b16 %v330
          %v445 = vunpack.c.l.b16 %v331
          %v446 = vpack.c.b16 %v415, %v414
          %v447 = vpack.c.b16 %v417, %v416
          %v448 = vpack.c.b16 %v419, %v418
          %v449 = vpack.c.b16 %v421, %v420
          %v450 = vpack.c.b16 %v423, %v422
          %v451 = vpack.c.b16 %v425, %v424
          %v452 = vpack.c.b16 %v427, %v426
          %v453 = vpack.c.b16 %v429, %v428
          %v454 = vpack.c.b16 %v431, %v430
          %v455 = vpack.c.b16 %v433, %v432
          %v456 = vpack.c.b16 %v435, %v434
          %v457 = vpack.c.b16 %v437, %v436
          %v458 = vpack.c.b16 %v439, %v438
          %v459 = vpack.c.b16 %v441, %v440
          %v460 = vpack.c.b16 %v443, %v442
          %v461 = vpack.c.b16 %v445, %v444
          %478 = vmatpush.bf16.msra.mxu0 %v453
          %479 = vmatpush.bf16.msra.mxu0 %v452
          %480 = vmatpush.bf16.msra.mxu0 %v451
          %481 = vmatpush.bf16.msra.mxu0 %v450
          %482 = vmatpush.bf16.msra.mxu0 %v449
          %483 = vmatpush.bf16.msra.mxu0 %v448
          %484 = vmatpush.bf16.msra.mxu0 %v447
          %485 = vmatpush.bf16.msra.mxu0 %v446
          %486 = vmatmul.bf16.gmra.mxu0 %v362
          %v487 = vpop.f32.mrf.mxu0
          %v488 = vadd.f32 0.0, %v487
          %v489 = vpop.f32.mrf.mxu0
          %v490 = vadd.f32 0.0, %v489
          %491 = vmatmul.bf16.gmra.mxu0 %v364
          %v492 = vpop.f32.mrf.mxu0
          %v493 = vadd.f32 0.0, %v492
          %v494 = vpop.f32.mrf.mxu0
          %v495 = vadd.f32 0.0, %v494
          %496 = vmatmul.bf16.gmra.mxu0 %v366
          %v497 = vpop.f32.mrf.mxu0
          %v498 = vadd.f32 0.0, %v497
          %v499 = vpop.f32.mrf.mxu0
          %v500 = vadd.f32 0.0, %v499
          %501 = vmatmul.bf16.gmra.mxu0 %v368
          %v502 = vpop.f32.mrf.mxu0
          %v503 = vadd.f32 0.0, %v502
          %v504 = vpop.f32.mrf.mxu0
          %v505 = vadd.f32 0.0, %v504
          %506 = vmatmul.bf16.gmra.mxu0 %v370
          %v507 = vpop.f32.mrf.mxu0
          %v508 = vadd.f32 0.0, %v507
          %v509 = vpop.f32.mrf.mxu0
          %v510 = vadd.f32 0.0, %v509
          %511 = vdwg.mxu0
          %512 = vmatpush.bf16.msra.mxu0 %v461
          %513 = vmatpush.bf16.msra.mxu0 %v460
          %514 = vmatpush.bf16.msra.mxu0 %v459
          %515 = vmatpush.bf16.msra.mxu0 %v458
          %516 = vmatpush.bf16.msra.mxu0 %v457
          %517 = vmatpush.bf16.msra.mxu0 %v456
          %518 = vmatpush.bf16.msra.mxu0 %v455
          %519 = vmatpush.bf16.msra.mxu0 %v454
          %520 = vmatmul.bf16.gmra.mxu0 %v363
          %v521 = vpop.f32.mrf.mxu0
          %v522 = vadd.f32 %v488, %v521
          %v523 = vpop.f32.mrf.mxu0
          %v524 = vadd.f32 %v490, %v523
          %525 = vmatmul.bf16.gmra.mxu0 %v365
          %v526 = vpop.f32.mrf.mxu0
          %v527 = vadd.f32 %v493, %v526
          %v528 = vpop.f32.mrf.mxu0
          %v529 = vadd.f32 %v495, %v528
          %530 = vmatmul.bf16.gmra.mxu0 %v367
          %v531 = vpop.f32.mrf.mxu0
          %v532 = vadd.f32 %v498, %v531
          %v533 = vpop.f32.mrf.mxu0
          %v534 = vadd.f32 %v500, %v533
          %535 = vmatmul.bf16.gmra.mxu0 %v369
          %v536 = vpop.f32.mrf.mxu0
          %v537 = vadd.f32 %v503, %v536
          %v538 = vpop.f32.mrf.mxu0
          %v539 = vadd.f32 %v505, %v538
          %540 = vmatmul.bf16.gmra.mxu0 %v371
          %v541 = vpop.f32.mrf.mxu0
          %v542 = vadd.f32 %v508, %v541
          %v543 = vpop.f32.mrf.mxu0
          %v544 = vadd.f32 %v510, %v543
          %545 = vdwg.mxu0
          %v546 = vadd.f32 %v280, %v522
          %v547 = vadd.f32 %v281, %v524
          %v548 = vadd.f32 %v282, %v527
          %v549 = vadd.f32 %v283, %v529
          %v550 = vadd.f32 %v284, %v532
          %v551 = vadd.f32 %v285, %v534
          %v552 = vadd.f32 %v286, %v537
          %v553 = vadd.f32 %v287, %v539
          %v554 = vadd.f32 %v288, %v542
          %v555 = vadd.f32 %v289, %v544
          %556 = vst [vmem:[#allocation10] sm:$0xff] %v546
          %557 = vst [vmem:[#allocation10 + $0x8] sm:$0xff] %v547
          %558 = vst [vmem:[#allocation10 + $0x10] sm:$0xff] %v548
          %559 = vst [vmem:[#allocation10 + $0x18] sm:$0xff] %v549
          %560 = vst [vmem:[#allocation10 + $0x20] sm:$0xff] %v550
          %561 = vst [vmem:[#allocation10 + $0x28] sm:$0xff] %v551
          %562 = vst [vmem:[#allocation10 + $0x30] sm:$0xff] %v552
          %563 = vst [vmem:[#allocation10 + $0x38] sm:$0xff] %v553
          %564 = vst [vmem:[#allocation10 + $0x40] sm:$0xff] %v554
          %565 = vst [vmem:[#allocation10 + $0x48] sm:$0xff] %v555
        $region44: #{tpu_custom_call.1} parent=27 // pred_fallthru
          _
        // Predicated region
        $region45: #{tpu_custom_call.1} parent=27 // pred_check
          %p566 = pneg %p128
        $region46: #{tpu_custom_call.1} parent=27 // pred_check_branch
          %568 = sbr.rel (%p566) target = $region48
        $region47: #{tpu_custom_call.1} parent=27 // pred_region
          %570 = vsyncadd [#allocation7], 0
          %s571 = smul.addr %s28, 10
          %s572 = smul.addr %s571, 8
          %s573 = scalar_lea.hbm %s4, %s572
          %s574 = sshll.u32 [#allocation10], 4
          %s575 = int_to_ptr.vmem [resolvable:$true] %s574
          %s576 = sshll.u32 %s573, 4
          %s577 = int_to_ptr.hbm [resolvable:$true] %s576
          %582 = dma.vmem_to_hbm [thread:$0]  %s575, 1280, %s577, [#allocation7], 128, 128, 8
        $region48: #{tpu_custom_call.1} parent=27 // pred_fallthru
          _
        // Predicated region
        $region49: #{tpu_custom_call.1} parent=27 // pred_check
          %p583 = pneg %p128
        $region50: #{tpu_custom_call.1} parent=27 // pred_check_branch
          %585 = sbr.rel (%p583) target = $region52
        $region51: #{tpu_custom_call.1} parent=27 // pred_region
          %587 = dma.done [#allocation7], 1280
        $region52: #{tpu_custom_call.1} parent=27 // pred_fallthru
          _
      $region28: #{tpu_custom_call.1} parent=5 // pred_fallthru
        _
      %p588 = scmp.le.s32.totalorder 2, %s19
      // Predicated region
      $region53: #{tpu_custom_call.1} parent=5 // pred_check
        %p589 = pneg %p588
      $region54: #{tpu_custom_call.1} parent=5 // pred_check_branch
        %591 = sbr.rel (%p589) target = $region56
      $region55: #{tpu_custom_call.1} parent=5 // pred_region
        %s592 = ssub.s32 %s19, 2
      $region56: #{tpu_custom_call.1} parent=5 // pred_fallthru
        _
    $region6: #{tpu_custom_call.1} parent=1 // loop_footer
      %s23 = sadd.s32 1, %s19
    $region7: #{tpu_custom_call.1} parent=1 // loop_footer_branch
      %18 = sbr.rel target = $region3
    $region8: #{tpu_custom_call.1} parent=1 // loop_exit
      _
    %593 = vsyncpa [#allocation6], 1
    %s594 = scalar_lea.sflag [#allocation6], 1
    %595 = vsyncpa %s594, 1
    %596 = vsyncpa [#allocation9], 1
    %s597 = scalar_lea.sflag [#allocation9], 1
    %598 = vsyncpa %s597, 1
    %599 = vsyncpa [#allocation7], 1
    %s600 = scalar_lea.sflag [#allocation7], 1
    %601 = vsyncpa %s600, 1

</llo_original>
